<compile_context>
chip_gen: v5e
topology: v5e:2x2
jax: 0.10.0
libtpu: 0.0.40
codegen_flags: <defaults>
</compile_context>

<pallas_src>
import functools

import jax
import jax.numpy as jnp
from jax.experimental import pallas as pl
from jax.experimental.pallas import tpu as pltpu


def _round_up(x, m):
    return (x + m - 1) // m * m


def _meta(obs_len, hidden_size):
    din = obs_len * 2 * 2            # forward always pairs agents (split(2, dim=1))
    h4 = hidden_size * 4
    h2 = hidden_size * 2
    dp = _round_up(din, 128)         # padded contraction dim of layer 1
    lanes = _round_up(h4, 128)       # slab lane width (covers 4H and 2H)
    return din, h4, h2, dp, lanes


def _mlp_kernel(x_ref, w_ref, b_ref, o_ref, *, dp, lanes):
    """x_ref: (tm, dp) bf16, w_ref: (dp+2*lanes, lanes) bf16 packed weights,
    b_ref: (8, lanes) f32 biases (rows 0,1,2), o_ref: (tm, lanes) f32."""
    x = x_ref[...]
    cdt = x.dtype

    # Layer 1: Linear(din, 4H) + ReLU.  Zero-padded rows/lanes contribute nothing.
    # Each weight slice stays adjacent to its dot (keeps vreg pressure ~20).
    h = jnp.dot(x, w_ref[0:dp, :], preferred_element_type=jnp.float32)
    h = jnp.maximum(h + b_ref[0:1, :], 0.0).astype(cdt)

    # Layer 2: Linear(4H, 4H) + ReLU.
    h = jnp.dot(h, w_ref[dp:dp + lanes, :], preferred_element_type=jnp.float32)
    h = jnp.maximum(h + b_ref[1:2, :], 0.0).astype(cdt)

    # Layer 3: Linear(4H, 2H).  Padded lanes of w3/b3 are zero -> pad lanes stay zero.
    o = jnp.dot(h, w_ref[dp + lanes:dp + 2 * lanes, :],
                preferred_element_type=jnp.float32)
    o_ref[...] = o + b_ref[2:3, :]


def init_params(key, obs_len, hidden_size, number_agents=2):
    """Weights stored pre-transposed as (in_features, out_features), f32."""
    din = obs_len * number_agents * 2
    h4 = hidden_size * 4
    h2 = hidden_size * 2
    dims = [(din, h4), (h4, h4), (h4, h2)]
    params = []
    for d_in, d_out in dims:
        key, kw, kb = jax.random.split(key, 3)
        bound = 1.0 / jnp.sqrt(d_in)
        w = jax.random.uniform(kw, (d_in, d_out), jnp.float32, -bound, bound)
        b = jax.random.uniform(kb, (d_out,), jnp.float32, -bound, bound)
        params.extend([w, b])
    return params


def pack_params(params, obs_len, hidden_size, compute_dtype=jnp.bfloat16):
    """Pack weights into one zero-padded bf16 slab + a tiny f32 bias slab."""
    w1, b1, w2, b2, w3, b3 = params
    din, h4, h2, dp, lanes = _meta(obs_len, hidden_size)

    def wseg(w, rows):
        w = jnp.asarray(w, jnp.float32)
        r, c = w.shape
        return jnp.zeros((rows, lanes), jnp.float32).at[:r, :c].set(w)

    w_slab = jnp.concatenate(
        [wseg(w1, dp), wseg(w2, lanes), wseg(w3, lanes)], axis=0
    ).astype(compute_dtype)

    b_slab = jnp.zeros((8, lanes), jnp.float32)
    b_slab = b_slab.at[0, :h4].set(jnp.asarray(b1, jnp.float32))
    b_slab = b_slab.at[1, :h4].set(jnp.asarray(b2, jnp.float32))
    b_slab = b_slab.at[2, :h2].set(jnp.asarray(b3, jnp.float32))
    return w_slab, b_slab


@functools.partial(jax.jit, static_argnames=("obs_len", "hidden_size", "row_tile"))
def simple_encoder_forward(obs_traj_rel, w_slab, b_slab, *,
                           obs_len, hidden_size, row_tile=256):
    din, h4, h2, dp, lanes = _meta(obs_len, hidden_size)
    T, N, C = obs_traj_rel.shape
    assert T == obs_len and C == 2 and N % 2 == 0
    m = N // 2                       # rows seen by the MLP (pairs of agents)

    # stack(split(2,dim=1),dim=1) -> permute(1,2,0,3) -> flatten(start_dim=1)
    # Pure layout ops; fused by XLA under this jit together with pad/cast/slice.
    x = obs_traj_rel.reshape(T, m, 2, 2)
    x = jnp.transpose(x, (1, 2, 0, 3)).reshape(m, din)
    x = x.astype(w_slab.dtype)

    # Row tile: full multiple of 8, capped at row_tile; pad rows/lanes so every
    # kernel load/store is an unmasked (8,128)-aligned tile.
    tm = min(row_tile, _round_up(m, 8))
    mp = _round_up(m, tm)
    x = jnp.pad(x, ((0, mp - m), (0, dp - din)))

    w_rows = dp + 2 * lanes
    kernel = functools.partial(_mlp_kernel, dp=dp, lanes=lanes)

    cost = pl.CostEstimate(
        flops=2 * mp * lanes * (dp + 2 * lanes),
        transcendentals=0,
        bytes_accessed=(x.size * x.dtype.itemsize
                        + w_slab.size * w_slab.dtype.itemsize
                        + b_slab.size * 4
                        + mp * lanes * 4),
    )

    out = pl.pallas_call(
        kernel,
        out_shape=jax.ShapeDtypeStruct((mp, lanes), jnp.float32),
        grid_spec=pltpu.PrefetchScalarGridSpec(
            num_scalar_prefetch=0,
            grid=(mp // tm,),
            in_specs=[
                pl.BlockSpec((tm, dp), lambda i: (i, 0)),        # row tile of x
                pl.BlockSpec((w_rows, lanes), lambda i: (0, 0)),  # weights, resident
                pl.BlockSpec((8, lanes), lambda i: (0, 0)),       # biases, resident
            ],
            out_specs=pl.BlockSpec((tm, lanes), lambda i: (i, 0)),
        ),
        compiler_params=pltpu.CompilerParams(
            dimension_semantics=("parallel",)),
        cost_estimate=cost,
    )(x, w_slab, b_slab)

    encoded = out[:m, :h2]
    # split(H, dim=1) -> stack(dim=1) -> flatten(0,1)  ==  contiguous reshape.
    return encoded.reshape(2 * m, hidden_size)


def _reference(obs_traj_rel, params, obs_len, hidden_size):
    w1, b1, w2, b2, w3, b3 = params
    T, N, _ = obs_traj_rel.shape
    m = N // 2
    x = obs_traj_rel.reshape(T, m, 2, 2)
    x = jnp.transpose(x, (1, 2, 0, 3)).reshape(m, -1)
    h = jnp.maximum(x @ w1 + b1, 0.0)
    h = jnp.maximum(h @ w2 + b2, 0.0)
    y = h @ w3 + b3
    return y.reshape(2 * m, hidden_size)


if __name__ == "__main__":
    obs_len, hidden_size, number_agents = 8, 32, 2

    key = jax.random.PRNGKey(0)
    k_in, k_p, k_big = jax.random.split(key, 3)

    params = init_params(k_p, obs_len, hidden_size, number_agents)
    w_slab, b_slab = pack_params(params, obs_len, hidden_size)

    # Small case matching the module's typical call: batch=2 scenes -> 4 agents.
    batch = 2
    obs = jax.random.normal(k_in, (obs_len, batch * number_agents, 2), jnp.float32)
    out = jax.block_until_ready(simple_encoder_forward(
        obs, w_slab, b_slab, obs_len=obs_len, hidden_size=hidden_size))
    ref = _reference(obs, params, obs_len, hidden_size)
    assert out.shape == (batch * number_agents, hidden_size)
    assert jnp.allclose(out, ref, atol=5e-2, rtol=5e-2), \
        float(jnp.max(jnp.abs(out - ref)))

    # Batched case exercising the row grid (3 tiles of 256 rows, resident slab).
    big_batch = 600
    obs_big = jax.random.normal(
        k_big, (obs_len, big_batch * number_agents, 2), jnp.float32)
    out_big = jax.block_until_ready(simple_encoder_forward(
        obs_big, w_slab, b_slab, obs_len=obs_len, hidden_size=hidden_size))
    ref_big = _reference(obs_big, params, obs_len, hidden_size)
    assert out_big.shape == (big_batch * number_agents, hidden_size)
    assert jnp.allclose(out_big, ref_big, atol=5e-2, rtol=5e-2), \
        float(jnp.max(jnp.abs(out_big - ref_big)))

    print("KERNEL_OK")
</pallas_src>

<mosaic_0001>
module attributes {stable_mosaic.version = 11 : i64} {
  func.func @_mlp_kernel(%arg0: i32, %arg1: memref<8x128xbf16, #tpu.memory_space<vmem>>, %arg2: memref<384x128xbf16, #tpu.memory_space<vmem>>, %arg3: memref<8x128xf32, #tpu.memory_space<vmem>>, %arg4: memref<8x128xf32, #tpu.memory_space<vmem>>) attributes {dimension_semantics = [#tpu.dimension_semantics<parallel>], iteration_bounds = array<i64: 1>, scalar_prefetch = 0 : i64, scratch_operands = 0 : i64, tpu.core_type = #tpu.core_type<tc>, window_params = [{transform_indices = @transform_0, window_bounds = array<i64: 8, 128>}, {pipeline_mode = #tpu.pipeline_mode<synchronous>, transform_indices = @transform_1, window_bounds = array<i64: 384, 128>}, {pipeline_mode = #tpu.pipeline_mode<synchronous>, transform_indices = @transform_2, window_bounds = array<i64: 8, 128>}, {transform_indices = @transform_3, window_bounds = array<i64: 8, 128>}]} {
    %c0 = arith.constant 0 : index
    %c0_0 = arith.constant 0 : index
    %0 = vector.load %arg1[%c0, %c0_0] : memref<8x128xbf16, #tpu.memory_space<vmem>>, vector<8x128xbf16>
    %c0_1 = arith.constant 0 : index
    %c0_2 = arith.constant 0 : index
    %1 = vector.load %arg2[%c0_1, %c0_2] : memref<384x128xbf16, #tpu.memory_space<vmem>>, vector<128x128xbf16>
    %cst = arith.constant dense<0.000000e+00> : vector<8x128xf32>
    %2 = tpu.matmul %0, %1, %cst {dimension_numbers = #tpu.dot_dimension_numbers<[1], [0], [0], [1], [0, 0, 1, 1], [], []>} : vector<8x128xbf16>, vector<128x128xbf16>, vector<8x128xf32> -> vector<8x128xf32>
    %c0_3 = arith.constant 0 : index
    %c0_4 = arith.constant 0 : index
    %3 = vector.load %arg3[%c0_3, %c0_4] : memref<8x128xf32, #tpu.memory_space<vmem>>, vector<1x128xf32>
    %4 = vector.broadcast %3 : vector<1x128xf32> to vector<8x128xf32>
    %5 = arith.addf %2, %4 : vector<8x128xf32>
    %cst_5 = arith.constant 0.000000e+00 : f32
    %6 = vector.broadcast %cst_5 : f32 to vector<8x128xf32>
    %7 = arith.maximumf %5, %6 : vector<8x128xf32>
    %8 = arith.truncf %7 : vector<8x128xf32> to vector<8x128xbf16>
    %c128 = arith.constant 128 : index
    %c0_6 = arith.constant 0 : index
    %9 = vector.load %arg2[%c128, %c0_6] : memref<384x128xbf16, #tpu.memory_space<vmem>>, vector<128x128xbf16>
    %cst_7 = arith.constant dense<0.000000e+00> : vector<8x128xf32>
    %10 = tpu.matmul %8, %9, %cst_7 {dimension_numbers = #tpu.dot_dimension_numbers<[1], [0], [0], [1], [0, 0, 1, 1], [], []>} : vector<8x128xbf16>, vector<128x128xbf16>, vector<8x128xf32> -> vector<8x128xf32>
    %c1 = arith.constant 1 : index
    %c0_8 = arith.constant 0 : index
    %11 = vector.load %arg3[%c1, %c0_8] : memref<8x128xf32, #tpu.memory_space<vmem>>, vector<1x128xf32>
    %12 = vector.broadcast %11 : vector<1x128xf32> to vector<8x128xf32>
    %13 = arith.addf %10, %12 : vector<8x128xf32>
    %cst_9 = arith.constant 0.000000e+00 : f32
    %14 = vector.broadcast %cst_9 : f32 to vector<8x128xf32>
    %15 = arith.maximumf %13, %14 : vector<8x128xf32>
    %16 = arith.truncf %15 : vector<8x128xf32> to vector<8x128xbf16>
    %c256 = arith.constant 256 : index
    %c0_10 = arith.constant 0 : index
    %17 = vector.load %arg2[%c256, %c0_10] : memref<384x128xbf16, #tpu.memory_space<vmem>>, vector<128x128xbf16>
    %cst_11 = arith.constant dense<0.000000e+00> : vector<8x128xf32>
    %18 = tpu.matmul %16, %17, %cst_11 {dimension_numbers = #tpu.dot_dimension_numbers<[1], [0], [0], [1], [0, 0, 1, 1], [], []>} : vector<8x128xbf16>, vector<128x128xbf16>, vector<8x128xf32> -> vector<8x128xf32>
    %c2 = arith.constant 2 : index
    %c0_12 = arith.constant 0 : index
    %19 = vector.load %arg3[%c2, %c0_12] : memref<8x128xf32, #tpu.memory_space<vmem>>, vector<1x128xf32>
    %20 = vector.broadcast %19 : vector<1x128xf32> to vector<8x128xf32>
    %21 = arith.addf %18, %20 : vector<8x128xf32>
    %c0_13 = arith.constant 0 : index
    %c0_14 = arith.constant 0 : index
    %22 = vector.load %arg4[%c0_13, %c0_14] : memref<8x128xf32, #tpu.memory_space<vmem>>, vector<8x128xf32>
    tpu.vector_store %arg4[%c0_13, %c0_14], %21 {strides = array<i32>} : memref<8x128xf32, #tpu.memory_space<vmem>>, vector<8x128xf32>,
    return
  }
  func.func @transform_0(%arg0: i32) -> (i32, i32) {
    %c0_i32 = arith.constant 0 : i32
    %c0_i32_0 = arith.constant 0 : i32
    return %arg0, %c0_i32 : i32, i32
  }
  func.func @transform_1(%arg0: i32) -> (i32, i32) {
    %c0_i32 = arith.constant 0 : i32
    %c0_i32_0 = arith.constant 0 : i32
    %c0_i32_1 = arith.constant 0 : i32
    return %c0_i32, %c0_i32_0 : i32, i32
  }
  func.func @transform_2(%arg0: i32) -> (i32, i32) {
    %c0_i32 = arith.constant 0 : i32
    %c0_i32_0 = arith.constant 0 : i32
    %c0_i32_1 = arith.constant 0 : i32
    return %c0_i32, %c0_i32_0 : i32, i32
  }
  func.func @transform_3(%arg0: i32) -> (i32, i32) {
    %c0_i32 = arith.constant 0 : i32
    %c0_i32_0 = arith.constant 0 : i32
    return %arg0, %c0_i32 : i32, i32
  }
}

</mosaic_0001>

<llo_original>
// kernel: simple_encoder_forward.1
$region0: #{simple_encoder_forward.1}
  #allocation0 [shape = 'u32[]', space=smem, size = 0x4, offset = 0x4, fixed_abs, tag = 'smem constant byte address 0x4 - core index']
  #allocation1 [shape = 'u32[72,128]{1,0:T(1,128)}', space=vmem, size = 0x9000, scoped, tag = 'internal scratch']
  %s0 = inlined_call_operand.vmem [shape: bf16[8,128], index: 0, kind: input, shape index: {}]
  %s1 = inlined_call_operand.hbm [shape: bf16[384,128], index: 1, kind: input, shape index: {}]
  %s2 = inlined_call_operand.vmem [shape: f32[8,128], index: 2, kind: input, shape index: {}]
  %s3 = inlined_call_operand.vmem [shape: f32[8,128], index: 3, kind: output, shape index: {}]
  %s4 = sld [smem:[#allocation0]]
  $region26: #{simple_encoder_forward.1} parent=0
    _
  %s6 = ssub.s32 1, %s4
  %s7 = scalar_select 0, %s6, %s4
  $region1: #{simple_encoder_forward.1} parent=0
    #allocation2 [shape = 'u8[98304]{0}', space=vmem, size = 0x18000, scoped, tag = 'input window, operand 1, single buffered']
    #allocation3 [shape = 's32[1]{0}', space=sflag, size = 0x4, scoped, tag = 'scoped memory for simple_encoder_forward.1']
    %8 = vsyncpa [#allocation3], 0
    // Predicated region
    $region2: #{simple_encoder_forward.1} parent=1 // pred_check
      _
    $region3: #{simple_encoder_forward.1} parent=1 // pred_check_branch
      %10 = sbr.rel (0) target = $region5
    $region4: #{simple_encoder_forward.1} parent=1 // pred_region
      _
    $region5: #{simple_encoder_forward.1} parent=1 // pred_fallthru
      _
    // Predicated region
    $region6: #{simple_encoder_forward.1} parent=1 // pred_check
      _
    $region7: #{simple_encoder_forward.1} parent=1 // pred_check_branch
      %12 = sbr.rel (0) target = $region9
    $region8: #{simple_encoder_forward.1} parent=1 // pred_region
      %14 = vsyncadd [#allocation3], 0
      %s15 = sshll.u32 %s1, 4
      %s16 = int_to_ptr.hbm [resolvable:$true] %s15
      %s17 = sshll.u32 [#allocation2], 4
      %s18 = int_to_ptr.vmem [resolvable:$true] %s17
      %23 = dma.hbm_to_vmem [thread:$0]  %s16, 3072, %s18, [#allocation3], 64, 64, 4
    $region9: #{simple_encoder_forward.1} parent=1 // pred_fallthru
      _
    // Predicated region
    $region10: #{simple_encoder_forward.1} parent=1 // pred_check
      _
    $region11: #{simple_encoder_forward.1} parent=1 // pred_check_branch
      %25 = sbr.rel (0) target = $region13
    $region12: #{simple_encoder_forward.1} parent=1 // pred_region
      _
    $region13: #{simple_encoder_forward.1} parent=1 // pred_fallthru
      _
    // Predicated region
    $region14: #{simple_encoder_forward.1} parent=1 // pred_check
      _
    $region15: #{simple_encoder_forward.1} parent=1 // pred_check_branch
      %27 = sbr.rel (0) target = $region17
    $region16: #{simple_encoder_forward.1} parent=1 // pred_region
      %29 = dma.done [#allocation3], 3072
    $region17: #{simple_encoder_forward.1} parent=1 // pred_fallthru
      _
    %v30 = vld [vmem:[%s0] sm:$0xf]
    %v31 = vld [vmem:[#allocation2] sm:$0xf]
    %v32 = vld [vmem:[#allocation2 + $0x4] sm:$0xf]
    %v33 = vld [vmem:[#allocation2 + $0x8] sm:$0xf]
    %v34 = vld [vmem:[#allocation2 + $0xc] sm:$0xf]
    %v35 = vld [vmem:[#allocation2 + $0x10] sm:$0xf]
    %v36 = vld [vmem:[#allocation2 + $0x14] sm:$0xf]
    %v37 = vld [vmem:[#allocation2 + $0x18] sm:$0xf]
    %v38 = vld [vmem:[#allocation2 + $0x1c] sm:$0xf]
    %v39 = vld [vmem:[#allocation2 + $0x20] sm:$0xf]
    %v40 = vld [vmem:[#allocation2 + $0x24] sm:$0xf]
    %v41 = vld [vmem:[#allocation2 + $0x28] sm:$0xf]
    %v42 = vld [vmem:[#allocation2 + $0x2c] sm:$0xf]
    %v43 = vld [vmem:[#allocation2 + $0x30] sm:$0xf]
    %v44 = vld [vmem:[#allocation2 + $0x34] sm:$0xf]
    %v45 = vld [vmem:[#allocation2 + $0x38] sm:$0xf]
    %v46 = vld [vmem:[#allocation2 + $0x3c] sm:$0xf]
    %v47 = vld [vmem:[%s2] sm:$0x1]
    %v48 = vperm.slane %v47, 0
    %v65 = vunpack.c.l.b16 %v31
    %v66 = vunpack.c.l.b16 %v32
    %v67 = vunpack.c.l.b16 %v33
    %v68 = vunpack.c.l.b16 %v34
    %v69 = vunpack.c.l.b16 %v35
    %v70 = vunpack.c.l.b16 %v36
    %v71 = vunpack.c.l.b16 %v37
    %v72 = vunpack.c.l.b16 %v38
    %v73 = vunpack.c.l.b16 %v39
    %v74 = vunpack.c.l.b16 %v40
    %v75 = vunpack.c.l.b16 %v41
    %v76 = vunpack.c.l.b16 %v42
    %v77 = vunpack.c.l.b16 %v43
    %v78 = vunpack.c.l.b16 %v44
    %v79 = vunpack.c.l.b16 %v45
    %v80 = vunpack.c.l.b16 %v46
    %v81 = vpack.c.b16 %v66, %v65
    %v82 = vpack.c.b16 %v68, %v67
    %v83 = vpack.c.b16 %v70, %v69
    %v84 = vpack.c.b16 %v72, %v71
    %v85 = vpack.c.b16 %v74, %v73
    %v86 = vpack.c.b16 %v76, %v75
    %v87 = vpack.c.b16 %v78, %v77
    %v88 = vpack.c.b16 %v80, %v79
    %97 = vmatpush.bf16.msra.mxu0 %v88
    %98 = vmatpush.bf16.msra.mxu0 %v87
    %99 = vmatpush.bf16.msra.mxu0 %v86
    %100 = vmatpush.bf16.msra.mxu0 %v85
    %101 = vmatpush.bf16.msra.mxu0 %v84
    %102 = vmatpush.bf16.msra.mxu0 %v83
    %103 = vmatpush.bf16.msra.mxu0 %v82
    %104 = vmatpush.bf16.msra.mxu0 %v81
    %105 = vmatmul.bf16.gmra.mxu0 %v30
    %v106 = vpop.f32.mrf.mxu0
    %v107 = vadd.f32 %v48, %v106
    %v108 = vpop.f32.mrf.mxu0
    %109 = vdwg.mxu0
    %v110 = vmax.f32 %v107, 0.0
    %v111 = vpack.c.bf16 %v110, %v110
    %v112 = vld [vmem:[#allocation2 + $0x40] sm:$0xf]
    %v113 = vld [vmem:[#allocation2 + $0x44] sm:$0xf]
    %v114 = vld [vmem:[#allocation2 + $0x48] sm:$0xf]
    %v115 = vld [vmem:[#allocation2 + $0x4c] sm:$0xf]
    %v116 = vld [vmem:[#allocation2 + $0x50] sm:$0xf]
    %v117 = vld [vmem:[#allocation2 + $0x54] sm:$0xf]
    %v118 = vld [vmem:[#allocation2 + $0x58] sm:$0xf]
    %v119 = vld [vmem:[#allocation2 + $0x5c] sm:$0xf]
    %v120 = vld [vmem:[#allocation2 + $0x60] sm:$0xf]
    %v121 = vld [vmem:[#allocation2 + $0x64] sm:$0xf]
    %v122 = vld [vmem:[#allocation2 + $0x68] sm:$0xf]
    %v123 = vld [vmem:[#allocation2 + $0x6c] sm:$0xf]
    %v124 = vld [vmem:[#allocation2 + $0x70] sm:$0xf]
    %v125 = vld [vmem:[#allocation2 + $0x74] sm:$0xf]
    %v126 = vld [vmem:[#allocation2 + $0x78] sm:$0xf]
    %v127 = vld [vmem:[#allocation2 + $0x7c] sm:$0xf]
    %v128 = vld [vmem:[%s2 + $0x1] sm:$0x1]
    %v129 = vperm.slane %v128, 0
    %v146 = vunpack.c.l.b16 %v112
    %v147 = vunpack.c.l.b16 %v113
    %v148 = vunpack.c.l.b16 %v114
    %v149 = vunpack.c.l.b16 %v115
    %v150 = vunpack.c.l.b16 %v116
    %v151 = vunpack.c.l.b16 %v117
    %v152 = vunpack.c.l.b16 %v118
    %v153 = vunpack.c.l.b16 %v119
    %v154 = vunpack.c.l.b16 %v120
    %v155 = vunpack.c.l.b16 %v121
    %v156 = vunpack.c.l.b16 %v122
    %v157 = vunpack.c.l.b16 %v123
    %v158 = vunpack.c.l.b16 %v124
    %v159 = vunpack.c.l.b16 %v125
    %v160 = vunpack.c.l.b16 %v126
    %v161 = vunpack.c.l.b16 %v127
    %v162 = vpack.c.b16 %v147, %v146
    %v163 = vpack.c.b16 %v149, %v148
    %v164 = vpack.c.b16 %v151, %v150
    %v165 = vpack.c.b16 %v153, %v152
    %v166 = vpack.c.b16 %v155, %v154
    %v167 = vpack.c.b16 %v157, %v156
    %v168 = vpack.c.b16 %v159, %v158
    %v169 = vpack.c.b16 %v161, %v160
    %178 = vmatpush.bf16.msra.mxu0 %v169
    %179 = vmatpush.bf16.msra.mxu0 %v168
    %180 = vmatpush.bf16.msra.mxu0 %v167
    %181 = vmatpush.bf16.msra.mxu0 %v166
    %182 = vmatpush.bf16.msra.mxu0 %v165
    %183 = vmatpush.bf16.msra.mxu0 %v164
    %184 = vmatpush.bf16.msra.mxu0 %v163
    %185 = vmatpush.bf16.msra.mxu0 %v162
    %186 = vmatmul.bf16.gmra.mxu0 %v111
    %v187 = vpop.f32.mrf.mxu0
    %v188 = vadd.f32 %v129, %v187
    %v189 = vpop.f32.mrf.mxu0
    %190 = vdwg.mxu0
    %v191 = vmax.f32 %v188, 0.0
    %v192 = vpack.c.bf16 %v191, %v191
    %v193 = vld [vmem:[#allocation2 + $0x80] sm:$0xf]
    %v194 = vld [vmem:[#allocation2 + $0x84] sm:$0xf]
    %v195 = vld [vmem:[#allocation2 + $0x88] sm:$0xf]
    %v196 = vld [vmem:[#allocation2 + $0x8c] sm:$0xf]
    %v197 = vld [vmem:[#allocation2 + $0x90] sm:$0xf]
    %v198 = vld [vmem:[#allocation2 + $0x94] sm:$0xf]
    %v199 = vld [vmem:[#allocation2 + $0x98] sm:$0xf]
    %v200 = vld [vmem:[#allocation2 + $0x9c] sm:$0xf]
    %v201 = vld [vmem:[#allocation2 + $0xa0] sm:$0xf]
    %v202 = vld [vmem:[#allocation2 + $0xa4] sm:$0xf]
    %v203 = vld [vmem:[#allocation2 + $0xa8] sm:$0xf]
    %v204 = vld [vmem:[#allocation2 + $0xac] sm:$0xf]
    %v205 = vld [vmem:[#allocation2 + $0xb0] sm:$0xf]
    %v206 = vld [vmem:[#allocation2 + $0xb4] sm:$0xf]
    %v207 = vld [vmem:[#allocation2 + $0xb8] sm:$0xf]
    %v208 = vld [vmem:[#allocation2 + $0xbc] sm:$0xf]
    %v209 = vld [vmem:[%s2 + $0x2] sm:$0x1]
    %v210 = vperm.slane %v209, 0
    %v227 = vunpack.c.l.b16 %v193
    %v228 = vunpack.c.l.b16 %v194
    %v229 = vunpack.c.l.b16 %v195
    %v230 = vunpack.c.l.b16 %v196
    %v231 = vunpack.c.l.b16 %v197
    %v232 = vunpack.c.l.b16 %v198
    %v233 = vunpack.c.l.b16 %v199
    %v234 = vunpack.c.l.b16 %v200
    %v235 = vunpack.c.l.b16 %v201
    %v236 = vunpack.c.l.b16 %v202
    %v237 = vunpack.c.l.b16 %v203
    %v238 = vunpack.c.l.b16 %v204
    %v239 = vunpack.c.l.b16 %v205
    %v240 = vunpack.c.l.b16 %v206
    %v241 = vunpack.c.l.b16 %v207
    %v242 = vunpack.c.l.b16 %v208
    %v243 = vpack.c.b16 %v228, %v227
    %v244 = vpack.c.b16 %v230, %v229
    %v245 = vpack.c.b16 %v232, %v231
    %v246 = vpack.c.b16 %v234, %v233
    %v247 = vpack.c.b16 %v236, %v235
    %v248 = vpack.c.b16 %v238, %v237
    %v249 = vpack.c.b16 %v240, %v239
    %v250 = vpack.c.b16 %v242, %v241
    %259 = vmatpush.bf16.msra.mxu0 %v250
    %260 = vmatpush.bf16.msra.mxu0 %v249
    %261 = vmatpush.bf16.msra.mxu0 %v248
    %262 = vmatpush.bf16.msra.mxu0 %v247
    %263 = vmatpush.bf16.msra.mxu0 %v246
    %264 = vmatpush.bf16.msra.mxu0 %v245
    %265 = vmatpush.bf16.msra.mxu0 %v244
    %266 = vmatpush.bf16.msra.mxu0 %v243
    %267 = vmatmul.bf16.gmra.mxu0 %v192
    %v268 = vpop.f32.mrf.mxu0
    %v269 = vadd.f32 %v210, %v268
    %v270 = vpop.f32.mrf.mxu0
    %271 = vdwg.mxu0
    %272 = vst [vmem:[%s3] sm:$0xff] %v269
    // Predicated region
    $region18: #{simple_encoder_forward.1} parent=1 // pred_check
      _
    $region19: #{simple_encoder_forward.1} parent=1 // pred_check_branch
      %274 = sbr.rel (0) target = $region21
    $region20: #{simple_encoder_forward.1} parent=1 // pred_region
      _
    $region21: #{simple_encoder_forward.1} parent=1 // pred_fallthru
      _
    // Predicated region
    $region22: #{simple_encoder_forward.1} parent=1 // pred_check
      _
    $region23: #{simple_encoder_forward.1} parent=1 // pred_check_branch
      %276 = sbr.rel (0) target = $region25
    $region24: #{simple_encoder_forward.1} parent=1 // pred_region
      _
    $region25: #{simple_encoder_forward.1} parent=1 // pred_fallthru
      _
    %277 = vsyncpa [#allocation3], 1

</llo_original>
